<compile_context>
chip_gen: v7x
topology: tpu7x:2x2x1
jax: 0.10.0
libtpu: 0.0.40
codegen_flags: <defaults>
</compile_context>

<pallas_src>
import jax
import jax.numpy as jnp
from jax import lax
from jax.experimental import pallas as pl
from jax.experimental.pallas import tpu as pltpu

_SQRT_HALF = 0.7071067811865476
_LN_EPS = 1e-5


def _erf(z):
    # Abramowitz & Stegun 7.1.26 (|err| < 1.5e-7); exp + approx-reciprocal go to the EUP.
    a1, a2, a3, a4, a5 = 0.254829592, -0.284496736, 1.421413741, -1.453152027, 1.061405429
    pp = 0.3275911
    az = jnp.abs(z)
    t = pl.reciprocal(1.0 + pp * az, approx=True)
    poly = ((((a5 * t + a4) * t + a3) * t + a2) * t + a1) * t
    y = 1.0 - poly * jnp.exp(-az * az)
    return jnp.where(z >= 0.0, y, -y)


def _gelu(v):
    return 0.5 * v * (1.0 + _erf(v * _SQRT_HALF))


def _make_kernel(B, C, F, T, K):
    """Kernel closure over the static problem geometry."""
    P = K // 2
    BT = B * T
    L = F * BT
    KK = K * K

    def ln_gelu(v, gamma, beta):
        # Fused mean / mean-of-squares rotate-and-add tree: one tree over (2C, L).
        # Reduction (over n_feats) lives on stride-BT lanes; all shifts are multiples of
        # BT, so each lane only ever sums values with its own (batch, time) coordinates.
        s = jnp.concatenate([v, v * v], axis=0)            # (2C, L)
        shift = L // 2
        while shift >= BT:                                 # log2(F) XLU rolls total
            s = s + pltpu.roll(s, shift, axis=1)
            shift //= 2
        mean = s[0:C, :] * (1.0 / F)
        ex2 = s[C:2 * C, :] * (1.0 / F)
        inv = lax.rsqrt(ex2 - mean * mean + _LN_EPS)       # E[x^2] - mean^2 form
        return _gelu((v - mean) * inv * gamma + beta)

    def conv(h, mask_ref, w_ref, b_ref):
        # im2col via lane rotations + per-tap zero-padding masks, kept in registers,
        # then one MXU GEMM: out(C, L) = Wflat(C, K*K*C) @ col(K*K*C, L).
        # Invariant: any cyclically-wrapped (cross-batch / out-of-bounds) lane is zeroed
        # by its tap mask, so the roll modulus L is safe.
        parts = []
        for dy in range(K):                                # static unroll over k*k taps
            for dx in range(K):
                i = dy * K + dx
                s = (dy - P) * BT + (dx - P)               # flat (f, t) source offset
                if s == 0:
                    parts.append(h)                        # center tap: mask is all-ones
                else:
                    parts.append(pltpu.roll(h, (-s) % L, axis=1) * mask_ref[i])
        col = jnp.concatenate(parts, axis=0).astype(jnp.bfloat16)           # (KK*C, L)
        acc = jnp.dot(w_ref[...], col, preferred_element_type=jnp.float32)  # (C, L) f32
        return acc + b_ref[...]                                             # bias once

    def kernel(x_ref, gamma_ref, beta_ref, mask_ref, w1_ref, b1_ref, w2_ref, b2_ref, o_ref):
        x = x_ref[...]                                     # (C, L) f32 — whole batch
        gamma = gamma_ref[...]                             # (C, L), pre-broadcast
        beta = beta_ref[...]

        h = ln_gelu(x, gamma, beta)
        # TODO(synk): nn.Dropout is stochastic training-time behavior; identity here (eval mode).
        h = conv(h, mask_ref, w1_ref, b1_ref)
        h = ln_gelu(h, gamma, beta)                        # shared LayerNorm params (spec)
        h = conv(h, mask_ref, w2_ref, b2_ref)

        o_ref[...] = (h + x).astype(o_ref.dtype)           # residual; lane-dense store

    return kernel


def prepare_params(params, B, C, F, T):
    """One-time preprocessing of module parameters into kernel-ready constants.

    Call once and reuse across forward calls (hoists the transpose/reshape/cast/
    broadcast work out of the per-call path).
    """
    K = params["w1"].shape[2]
    P = K // 2
    BT = B * T
    L = F * BT
    KK = K * K

    # Shared LayerNorm params broadcast to the (C, L) lane layout: value depends on f only.
    gamma = jnp.broadcast_to(
        jnp.repeat(params["ln_gamma"].astype(jnp.float32), BT)[None, :], (C, L))
    beta = jnp.broadcast_to(
        jnp.repeat(params["ln_beta"].astype(jnp.float32), BT)[None, :], (C, L))

    # Pre-flattened conv weights: (Cout, K*K*Cin), rows ordered (dy, dx, ci); bf16 for MXU.
    def flatten_w(w):                                      # OIHW in
        cout, cin = w.shape[0], w.shape[1]
        return jnp.transpose(w, (0, 2, 3, 1)).reshape(cout, KK * cin).astype(jnp.bfloat16)

    # Per-tap validity masks over lanes n = f*BT + b*T + t, pre-broadcast over channels
    # so the kernel does aligned full-shape (C, L) multiplies (no sublane broadcasts).
    n = jnp.arange(L, dtype=jnp.int32)
    f_idx = n // BT
    t_idx = n % T
    taps = []
    for dy in range(K):
        for dx in range(K):
            df, dt = dy - P, dx - P
            ok = (f_idx + df >= 0) & (f_idx + df < F) & (t_idx + dt >= 0) & (t_idx + dt < T)
            taps.append(ok.astype(jnp.float32))
    mask = jnp.broadcast_to(jnp.stack(taps, axis=0)[:, None, :], (KK, C, L))

    return {
        "gamma": gamma,
        "beta": beta,
        "mask": mask,
        "w1": flatten_w(params["w1"]),
        "b1": jnp.broadcast_to(params["b1"].astype(jnp.float32)[:, None], (C, L)),
        "w2": flatten_w(params["w2"]),
        "b2": jnp.broadcast_to(params["b2"].astype(jnp.float32)[:, None], (C, L)),
    }


@jax.jit
def residual_cnn(x_nchw, prepped):
    """x_nchw: (B, C, n_feats, time) float32; returns the same NCHW shape."""
    B, C, F, T = x_nchw.shape
    KKC = prepped["w1"].shape[1]
    KK = KKC // C
    K = int(round(KK ** 0.5))
    BT = B * T
    L = F * BT
    assert F & (F - 1) == 0, "n_feats must be a power of two for the rotate-tree LayerNorm"
    assert L % 128 == 0, "folded lane axis must be a multiple of 128"

    # Lane ordering n = f*(B*T) + b*T + t (small transpose, fused by jit around the call).
    x2 = jnp.transpose(x_nchw.astype(jnp.float32), (1, 2, 0, 3)).reshape(C, L)

    kernel = _make_kernel(B, C, F, T, K)

    out2 = pl.pallas_call(
        kernel,
        out_shape=jax.ShapeDtypeStruct((C, L), jnp.float32),
        grid=(1,),                                         # single step: whole batch folded on lanes
        in_specs=[
            pl.BlockSpec((C, L), lambda i: (0, 0)),        # x (lane-dense, 512 lanes)
            pl.BlockSpec((C, L), lambda i: (0, 0)),        # gamma (pre-broadcast)
            pl.BlockSpec((C, L), lambda i: (0, 0)),        # beta  (pre-broadcast)
            pl.BlockSpec((KK, C, L), lambda i: (0, 0, 0)),  # per-tap border masks
            pl.BlockSpec((C, KKC), lambda i: (0, 0)),      # w1 flat (bf16)
            pl.BlockSpec((C, L), lambda i: (0, 0)),        # b1 (pre-broadcast)
            pl.BlockSpec((C, KKC), lambda i: (0, 0)),      # w2 flat (bf16)
            pl.BlockSpec((C, L), lambda i: (0, 0)),        # b2 (pre-broadcast)
        ],
        out_specs=pl.BlockSpec((C, L), lambda i: (0, 0)),  # lane-dense output store
    )(x2, prepped["gamma"], prepped["beta"], prepped["mask"],
      prepped["w1"], prepped["b1"], prepped["w2"], prepped["b2"])

    return jnp.transpose(out2.reshape(C, F, B, T), (2, 0, 1, 3))


# -------------------- pure-JAX reference (sanity check) --------------------
def residual_cnn_reference(x, params):
    K = params["w1"].shape[2]
    pad = K // 2

    def ln(v):
        vt = jnp.transpose(v, (0, 1, 3, 2))                # (B, C, T, F)
        m = jnp.mean(vt, -1, keepdims=True)
        var = jnp.mean((vt - m) ** 2, -1, keepdims=True)
        y = (vt - m) / jnp.sqrt(var + _LN_EPS) * params["ln_gamma"] + params["ln_beta"]
        return jnp.transpose(y, (0, 1, 3, 2))

    def conv(v, w, b):
        out = lax.conv_general_dilated(
            v, w, (1, 1), [(pad, pad), (pad, pad)],
            dimension_numbers=("NCHW", "OIHW", "NCHW"),
            precision=lax.Precision.HIGHEST)
        return out + b.reshape(1, -1, 1, 1)

    h = jax.nn.gelu(ln(x), approximate=False)
    h = conv(h, params["w1"], params["b1"])
    h = jax.nn.gelu(ln(h), approximate=False)
    h = conv(h, params["w2"], params["b2"])
    return h + x


if __name__ == "__main__":
    # module config: in_channels = out_channels = 4, kernel = 3, stride = 1,
    # dropout = 0.1 (identity at eval), n_feats = 16, time = 16
    B, C, N_FEATS, T, K = 2, 4, 16, 16, 3

    key = jax.random.PRNGKey(0)
    kx, kw1, kb1, kw2, kb2 = jax.random.split(key, 5)

    x = jax.random.normal(kx, (B, C, N_FEATS, T), dtype=jnp.float32)
    params = {
        "ln_gamma": jnp.ones((N_FEATS,), jnp.float32),     # nn.LayerNorm default weight
        "ln_beta": jnp.zeros((N_FEATS,), jnp.float32),     # zeroed in __init__
        "w1": 0.1 * jax.random.normal(kw1, (C, C, K, K), dtype=jnp.float32),  # OIHW
        "b1": 0.1 * jax.random.normal(kb1, (C,), dtype=jnp.float32),
        "w2": 0.1 * jax.random.normal(kw2, (C, C, K, K), dtype=jnp.float32),
        "b2": 0.1 * jax.random.normal(kb2, (C,), dtype=jnp.float32),
    }

    prepped = prepare_params(params, B, C, N_FEATS, T)     # one-time hoisted preprocessing
    out = jax.block_until_ready(residual_cnn(x, prepped))
    ref = residual_cnn_reference(x, params)

    assert out.shape == (B, C, N_FEATS, T)
    max_err = float(jnp.max(jnp.abs(out - ref)))
    # bf16 MXU operands (f32 accumulation) + approx-erf -> slightly loose tolerance.
    assert jnp.allclose(out, ref, atol=5e-2, rtol=5e-2), (
        "mismatch: max abs err = %e" % max_err)

    print("KERNEL_OK")
</pallas_src>

<mosaic_0001>
module attributes {stable_mosaic.version = 11 : i64} {
  func.func @kernel(%arg0: i32, %arg1: memref<4x512xf32, #tpu.memory_space<vmem>>, %arg2: memref<4x512xf32, #tpu.memory_space<vmem>>, %arg3: memref<4x512xf32, #tpu.memory_space<vmem>>, %arg4: memref<9x4x512xf32, #tpu.memory_space<vmem>>, %arg5: memref<4x36xbf16, #tpu.memory_space<vmem>>, %arg6: memref<4x512xf32, #tpu.memory_space<vmem>>, %arg7: memref<4x36xbf16, #tpu.memory_space<vmem>>, %arg8: memref<4x512xf32, #tpu.memory_space<vmem>>, %arg9: memref<4x512xf32, #tpu.memory_space<vmem>>) attributes {dimension_semantics = [#tpu.dimension_semantics<arbitrary>], iteration_bounds = array<i64: 1>, scalar_prefetch = 0 : i64, scratch_operands = 0 : i64, tpu.core_type = #tpu.core_type<tc>, window_params = [{pipeline_mode = #tpu.pipeline_mode<synchronous>, transform_indices = @transform_0, window_bounds = array<i64: 4, 512>}, {pipeline_mode = #tpu.pipeline_mode<synchronous>, transform_indices = @transform_1, window_bounds = array<i64: 4, 512>}, {pipeline_mode = #tpu.pipeline_mode<synchronous>, transform_indices = @transform_2, window_bounds = array<i64: 4, 512>}, {pipeline_mode = #tpu.pipeline_mode<synchronous>, transform_indices = @transform_3, window_bounds = array<i64: 9, 4, 512>}, {pipeline_mode = #tpu.pipeline_mode<synchronous>, transform_indices = @transform_4, window_bounds = array<i64: 4, 36>}, {pipeline_mode = #tpu.pipeline_mode<synchronous>, transform_indices = @transform_5, window_bounds = array<i64: 4, 512>}, {pipeline_mode = #tpu.pipeline_mode<synchronous>, transform_indices = @transform_6, window_bounds = array<i64: 4, 36>}, {pipeline_mode = #tpu.pipeline_mode<synchronous>, transform_indices = @transform_7, window_bounds = array<i64: 4, 512>}, {pipeline_mode = #tpu.pipeline_mode<synchronous>, transform_indices = @transform_8, window_bounds = array<i64: 4, 512>}]} {
    %c0 = arith.constant 0 : index
    %c0_0 = arith.constant 0 : index
    %0 = vector.load %arg1[%c0, %c0_0] : memref<4x512xf32, #tpu.memory_space<vmem>>, vector<4x512xf32>
    %c0_1 = arith.constant 0 : index
    %c0_2 = arith.constant 0 : index
    %1 = vector.load %arg2[%c0_1, %c0_2] : memref<4x512xf32, #tpu.memory_space<vmem>>, vector<4x512xf32>
    %c0_3 = arith.constant 0 : index
    %c0_4 = arith.constant 0 : index
    %2 = vector.load %arg3[%c0_3, %c0_4] : memref<4x512xf32, #tpu.memory_space<vmem>>, vector<4x512xf32>
    %3 = arith.mulf %0, %0 : vector<4x512xf32>
    %4 = tpu.concatenate %0, %3 in 0 : vector<4x512xf32>, vector<4x512xf32> -> vector<8x512xf32>
    %c256_i32 = arith.constant 256 : i32
    %5 = tpu.dynamic_rotate %4 by %c256_i32 dim 1 : vector<8x512xf32>, i32 -> vector<8x512xf32>
    %6 = arith.addf %4, %5 : vector<8x512xf32>
    %c128_i32 = arith.constant 128 : i32
    %7 = tpu.dynamic_rotate %6 by %c128_i32 dim 1 : vector<8x512xf32>, i32 -> vector<8x512xf32>
    %8 = arith.addf %6, %7 : vector<8x512xf32>
    %c64_i32 = arith.constant 64 : i32
    %9 = tpu.dynamic_rotate %8 by %c64_i32 dim 1 : vector<8x512xf32>, i32 -> vector<8x512xf32>
    %10 = arith.addf %8, %9 : vector<8x512xf32>
    %c32_i32 = arith.constant 32 : i32
    %11 = tpu.dynamic_rotate %10 by %c32_i32 dim 1 : vector<8x512xf32>, i32 -> vector<8x512xf32>
    %12 = arith.addf %10, %11 : vector<8x512xf32>
    %13 = vector.extract_strided_slice %12 {offsets = [0, 0], sizes = [4, 512], strides = [1, 1]} : vector<8x512xf32> to vector<4x512xf32>
    %cst = arith.constant 6.250000e-02 : f32
    %14 = vector.broadcast %cst : f32 to vector<4x512xf32>
    %15 = arith.mulf %13, %14 : vector<4x512xf32>
    %16 = vector.extract_strided_slice %12 {offsets = [4, 0], sizes = [4, 512], strides = [1, 1]} : vector<8x512xf32> to vector<4x512xf32>
    %cst_5 = arith.constant 6.250000e-02 : f32
    %17 = vector.broadcast %cst_5 : f32 to vector<4x512xf32>
    %18 = arith.mulf %16, %17 : vector<4x512xf32>
    %19 = arith.mulf %15, %15 : vector<4x512xf32>
    %20 = arith.subf %18, %19 : vector<4x512xf32>
    %cst_6 = arith.constant 9.99999974E-6 : f32
    %21 = vector.broadcast %cst_6 : f32 to vector<4x512xf32>
    %22 = arith.addf %20, %21 : vector<4x512xf32>
    %23 = math.rsqrt %22 : vector<4x512xf32>
    %24 = arith.subf %0, %15 : vector<4x512xf32>
    %25 = arith.mulf %24, %23 : vector<4x512xf32>
    %26 = arith.mulf %25, %1 : vector<4x512xf32>
    %27 = arith.addf %26, %2 : vector<4x512xf32>
    %cst_7 = arith.constant 5.000000e-01 : f32
    %28 = vector.broadcast %cst_7 : f32 to vector<4x512xf32>
    %29 = arith.mulf %28, %27 : vector<4x512xf32>
    %cst_8 = arith.constant 0.707106769 : f32
    %30 = vector.broadcast %cst_8 : f32 to vector<4x512xf32>
    %31 = arith.mulf %27, %30 : vector<4x512xf32>
    %32 = math.absf %31 : vector<4x512xf32>
    %cst_9 = arith.constant 0.327591091 : f32
    %33 = vector.broadcast %cst_9 : f32 to vector<4x512xf32>
    %34 = arith.mulf %33, %32 : vector<4x512xf32>
    %cst_10 = arith.constant 1.000000e+00 : f32
    %35 = vector.broadcast %cst_10 : f32 to vector<4x512xf32>
    %36 = arith.addf %35, %34 : vector<4x512xf32>
    %37 = tpu.reciprocal %36 {approx = true} : vector<4x512xf32> -> vector<4x512xf32>
    %cst_11 = arith.constant 1.06140542 : f32
    %38 = vector.broadcast %cst_11 : f32 to vector<4x512xf32>
    %39 = arith.mulf %38, %37 : vector<4x512xf32>
    %cst_12 = arith.constant -1.45315206 : f32
    %40 = vector.broadcast %cst_12 : f32 to vector<4x512xf32>
    %41 = arith.addf %39, %40 : vector<4x512xf32>
    %42 = arith.mulf %41, %37 : vector<4x512xf32>
    %cst_13 = arith.constant 1.42141378 : f32
    %43 = vector.broadcast %cst_13 : f32 to vector<4x512xf32>
    %44 = arith.addf %42, %43 : vector<4x512xf32>
    %45 = arith.mulf %44, %37 : vector<4x512xf32>
    %cst_14 = arith.constant -0.284496725 : f32
    %46 = vector.broadcast %cst_14 : f32 to vector<4x512xf32>
    %47 = arith.addf %45, %46 : vector<4x512xf32>
    %48 = arith.mulf %47, %37 : vector<4x512xf32>
    %cst_15 = arith.constant 0.254829586 : f32
    %49 = vector.broadcast %cst_15 : f32 to vector<4x512xf32>
    %50 = arith.addf %48, %49 : vector<4x512xf32>
    %51 = arith.mulf %50, %37 : vector<4x512xf32>
    %cst_16 = arith.constant 0.000000e+00 : f32
    %52 = vector.broadcast %cst_16 : f32 to vector<4x512xf32>
    %53 = arith.subf %52, %32 : vector<4x512xf32>
    %54 = arith.mulf %53, %32 : vector<4x512xf32>
    %55 = math.exp %54 : vector<4x512xf32>
    %56 = arith.mulf %51, %55 : vector<4x512xf32>
    %cst_17 = arith.constant 1.000000e+00 : f32
    %57 = vector.broadcast %cst_17 : f32 to vector<4x512xf32>
    %58 = arith.subf %57, %56 : vector<4x512xf32>
    %cst_18 = arith.constant 0.000000e+00 : f32
    %59 = vector.broadcast %cst_18 : f32 to vector<4x512xf32>
    %60 = arith.cmpf oge, %31, %59 : vector<4x512xf32>
    %cst_19 = arith.constant 0.000000e+00 : f32
    %61 = vector.broadcast %cst_19 : f32 to vector<4x512xf32>
    %62 = arith.subf %61, %58 : vector<4x512xf32>
    %63 = arith.select %60, %58, %62 : vector<4x512xi1>, vector<4x512xf32>
    %cst_20 = arith.constant 1.000000e+00 : f32
    %64 = vector.broadcast %cst_20 : f32 to vector<4x512xf32>
    %65 = arith.addf %64, %63 : vector<4x512xf32>
    %66 = arith.mulf %29, %65 : vector<4x512xf32>
    %c33_i32 = arith.constant 33 : i32
    %67 = tpu.dynamic_rotate %66 by %c33_i32 dim 1 : vector<4x512xf32>, i32 -> vector<4x512xf32>
    %c0_21 = arith.constant 0 : index
    %c0_22 = arith.constant 0 : index
    %c0_23 = arith.constant 0 : index
    %68 = vector.load %arg4[%c0_21, %c0_22, %c0_23] : memref<9x4x512xf32, #tpu.memory_space<vmem>>, vector<1x4x512xf32>
    %69 = vector.shape_cast %68 : vector<1x4x512xf32> to vector<4x512xf32>
    %70 = arith.mulf %67, %69 : vector<4x512xf32>
    %c32_i32_24 = arith.constant 32 : i32
    %71 = tpu.dynamic_rotate %66 by %c32_i32_24 dim 1 : vector<4x512xf32>, i32 -> vector<4x512xf32>
    %c1 = arith.constant 1 : index
    %c0_25 = arith.constant 0 : index
    %c0_26 = arith.constant 0 : index
    %72 = vector.load %arg4[%c1, %c0_25, %c0_26] : memref<9x4x512xf32, #tpu.memory_space<vmem>>, vector<1x4x512xf32>
    %73 = vector.shape_cast %72 : vector<1x4x512xf32> to vector<4x512xf32>
    %74 = arith.mulf %71, %73 : vector<4x512xf32>
    %c31_i32 = arith.constant 31 : i32
    %75 = tpu.dynamic_rotate %66 by %c31_i32 dim 1 : vector<4x512xf32>, i32 -> vector<4x512xf32>
    %c2 = arith.constant 2 : index
    %c0_27 = arith.constant 0 : index
    %c0_28 = arith.constant 0 : index
    %76 = vector.load %arg4[%c2, %c0_27, %c0_28] : memref<9x4x512xf32, #tpu.memory_space<vmem>>, vector<1x4x512xf32>
    %77 = vector.shape_cast %76 : vector<1x4x512xf32> to vector<4x512xf32>
    %78 = arith.mulf %75, %77 : vector<4x512xf32>
    %c1_i32 = arith.constant 1 : i32
    %79 = tpu.dynamic_rotate %66 by %c1_i32 dim 1 : vector<4x512xf32>, i32 -> vector<4x512xf32>
    %c3 = arith.constant 3 : index
    %c0_29 = arith.constant 0 : index
    %c0_30 = arith.constant 0 : index
    %80 = vector.load %arg4[%c3, %c0_29, %c0_30] : memref<9x4x512xf32, #tpu.memory_space<vmem>>, vector<1x4x512xf32>
    %81 = vector.shape_cast %80 : vector<1x4x512xf32> to vector<4x512xf32>
    %82 = arith.mulf %79, %81 : vector<4x512xf32>
    %c511_i32 = arith.constant 511 : i32
    %83 = tpu.dynamic_rotate %66 by %c511_i32 dim 1 : vector<4x512xf32>, i32 -> vector<4x512xf32>
    %c5 = arith.constant 5 : index
    %c0_31 = arith.constant 0 : index
    %c0_32 = arith.constant 0 : index
    %84 = vector.load %arg4[%c5, %c0_31, %c0_32] : memref<9x4x512xf32, #tpu.memory_space<vmem>>, vector<1x4x512xf32>
    %85 = vector.shape_cast %84 : vector<1x4x512xf32> to vector<4x512xf32>
    %86 = arith.mulf %83, %85 : vector<4x512xf32>
    %c481_i32 = arith.constant 481 : i32
    %87 = tpu.dynamic_rotate %66 by %c481_i32 dim 1 : vector<4x512xf32>, i32 -> vector<4x512xf32>
    %c6 = arith.constant 6 : index
    %c0_33 = arith.constant 0 : index
    %c0_34 = arith.constant 0 : index
    %88 = vector.load %arg4[%c6, %c0_33, %c0_34] : memref<9x4x512xf32, #tpu.memory_space<vmem>>, vector<1x4x512xf32>
    %89 = vector.shape_cast %88 : vector<1x4x512xf32> to vector<4x512xf32>
    %90 = arith.mulf %87, %89 : vector<4x512xf32>
    %c480_i32 = arith.constant 480 : i32
    %91 = tpu.dynamic_rotate %66 by %c480_i32 dim 1 : vector<4x512xf32>, i32 -> vector<4x512xf32>
    %c7 = arith.constant 7 : index
    %c0_35 = arith.constant 0 : index
    %c0_36 = arith.constant 0 : index
    %92 = vector.load %arg4[%c7, %c0_35, %c0_36] : memref<9x4x512xf32, #tpu.memory_space<vmem>>, vector<1x4x512xf32>
    %93 = vector.shape_cast %92 : vector<1x4x512xf32> to vector<4x512xf32>
    %94 = arith.mulf %91, %93 : vector<4x512xf32>
    %c479_i32 = arith.constant 479 : i32
    %95 = tpu.dynamic_rotate %66 by %c479_i32 dim 1 : vector<4x512xf32>, i32 -> vector<4x512xf32>
    %c8 = arith.constant 8 : index
    %c0_37 = arith.constant 0 : index
    %c0_38 = arith.constant 0 : index
    %96 = vector.load %arg4[%c8, %c0_37, %c0_38] : memref<9x4x512xf32, #tpu.memory_space<vmem>>, vector<1x4x512xf32>
    %97 = vector.shape_cast %96 : vector<1x4x512xf32> to vector<4x512xf32>
    %98 = arith.mulf %95, %97 : vector<4x512xf32>
    %99 = tpu.concatenate %70, %74, %78, %82, %66, %86, %90, %94, %98 in 0 : vector<4x512xf32>, vector<4x512xf32>, vector<4x512xf32>, vector<4x512xf32>, vector<4x512xf32>, vector<4x512xf32>, vector<4x512xf32>, vector<4x512xf32>, vector<4x512xf32> -> vector<36x512xf32>
    %100 = arith.truncf %99 : vector<36x512xf32> to vector<36x512xbf16>
    %c0_39 = arith.constant 0 : index
    %c0_40 = arith.constant 0 : index
    %101 = vector.load %arg5[%c0_39, %c0_40] : memref<4x36xbf16, #tpu.memory_space<vmem>>, vector<4x36xbf16>
    %cst_41 = arith.constant dense<0.000000e+00> : vector<4x512xf32>
    %102 = tpu.matmul %101, %100, %cst_41 {dimension_numbers = #tpu.dot_dimension_numbers<[1], [0], [0], [1], [0, 0, 1, 1], [], []>} : vector<4x36xbf16>, vector<36x512xbf16>, vector<4x512xf32> -> vector<4x512xf32>
    %c0_42 = arith.constant 0 : index
    %c0_43 = arith.constant 0 : index
    %103 = vector.load %arg6[%c0_42, %c0_43] : memref<4x512xf32, #tpu.memory_space<vmem>>, vector<4x512xf32>
    %104 = arith.addf %102, %103 : vector<4x512xf32>
    %105 = arith.mulf %104, %104 : vector<4x512xf32>
    %106 = tpu.concatenate %104, %105 in 0 : vector<4x512xf32>, vector<4x512xf32> -> vector<8x512xf32>
    %c256_i32_44 = arith.constant 256 : i32
    %107 = tpu.dynamic_rotate %106 by %c256_i32_44 dim 1 : vector<8x512xf32>, i32 -> vector<8x512xf32>
    %108 = arith.addf %106, %107 : vector<8x512xf32>
    %c128_i32_45 = arith.constant 128 : i32
    %109 = tpu.dynamic_rotate %108 by %c128_i32_45 dim 1 : vector<8x512xf32>, i32 -> vector<8x512xf32>
    %110 = arith.addf %108, %109 : vector<8x512xf32>
    %c64_i32_46 = arith.constant 64 : i32
    %111 = tpu.dynamic_rotate %110 by %c64_i32_46 dim 1 : vector<8x512xf32>, i32 -> vector<8x512xf32>
    %112 = arith.addf %110, %111 : vector<8x512xf32>
    %c32_i32_47 = arith.constant 32 : i32
    %113 = tpu.dynamic_rotate %112 by %c32_i32_47 dim 1 : vector<8x512xf32>, i32 -> vector<8x512xf32>
    %114 = arith.addf %112, %113 : vector<8x512xf32>
    %115 = vector.extract_strided_slice %114 {offsets = [0, 0], sizes = [4, 512], strides = [1, 1]} : vector<8x512xf32> to vector<4x512xf32>
    %cst_48 = arith.constant 6.250000e-02 : f32
    %116 = vector.broadcast %cst_48 : f32 to vector<4x512xf32>
    %117 = arith.mulf %115, %116 : vector<4x512xf32>
    %118 = vector.extract_strided_slice %114 {offsets = [4, 0], sizes = [4, 512], strides = [1, 1]} : vector<8x512xf32> to vector<4x512xf32>
    %cst_49 = arith.constant 6.250000e-02 : f32
    %119 = vector.broadcast %cst_49 : f32 to vector<4x512xf32>
    %120 = arith.mulf %118, %119 : vector<4x512xf32>
    %121 = arith.mulf %117, %117 : vector<4x512xf32>
    %122 = arith.subf %120, %121 : vector<4x512xf32>
    %cst_50 = arith.constant 9.99999974E-6 : f32
    %123 = vector.broadcast %cst_50 : f32 to vector<4x512xf32>
    %124 = arith.addf %122, %123 : vector<4x512xf32>
    %125 = math.rsqrt %124 : vector<4x512xf32>
    %126 = arith.subf %104, %117 : vector<4x512xf32>
    %127 = arith.mulf %126, %125 : vector<4x512xf32>
    %128 = arith.mulf %127, %1 : vector<4x512xf32>
    %129 = arith.addf %128, %2 : vector<4x512xf32>
    %cst_51 = arith.constant 5.000000e-01 : f32
    %130 = vector.broadcast %cst_51 : f32 to vector<4x512xf32>
    %131 = arith.mulf %130, %129 : vector<4x512xf32>
    %cst_52 = arith.constant 0.707106769 : f32
    %132 = vector.broadcast %cst_52 : f32 to vector<4x512xf32>
    %133 = arith.mulf %129, %132 : vector<4x512xf32>
    %134 = math.absf %133 : vector<4x512xf32>
    %cst_53 = arith.constant 0.327591091 : f32
    %135 = vector.broadcast %cst_53 : f32 to vector<4x512xf32>
    %136 = arith.mulf %135, %134 : vector<4x512xf32>
    %cst_54 = arith.constant 1.000000e+00 : f32
    %137 = vector.broadcast %cst_54 : f32 to vector<4x512xf32>
    %138 = arith.addf %137, %136 : vector<4x512xf32>
    %139 = tpu.reciprocal %138 {approx = true} : vector<4x512xf32> -> vector<4x512xf32>
    %cst_55 = arith.constant 1.06140542 : f32
    %140 = vector.broadcast %cst_55 : f32 to vector<4x512xf32>
    %141 = arith.mulf %140, %139 : vector<4x512xf32>
    %cst_56 = arith.constant -1.45315206 : f32
    %142 = vector.broadcast %cst_56 : f32 to vector<4x512xf32>
    %143 = arith.addf %141, %142 : vector<4x512xf32>
    %144 = arith.mulf %143, %139 : vector<4x512xf32>
    %cst_57 = arith.constant 1.42141378 : f32
    %145 = vector.broadcast %cst_57 : f32 to vector<4x512xf32>
    %146 = arith.addf %144, %145 : vector<4x512xf32>
    %147 = arith.mulf %146, %139 : vector<4x512xf32>
    %cst_58 = arith.constant -0.284496725 : f32
    %148 = vector.broadcast %cst_58 : f32 to vector<4x512xf32>
    %149 = arith.addf %147, %148 : vector<4x512xf32>
    %150 = arith.mulf %149, %139 : vector<4x512xf32>
    %cst_59 = arith.constant 0.254829586 : f32
    %151 = vector.broadcast %cst_59 : f32 to vector<4x512xf32>
    %152 = arith.addf %150, %151 : vector<4x512xf32>
    %153 = arith.mulf %152, %139 : vector<4x512xf32>
    %cst_60 = arith.constant 0.000000e+00 : f32
    %154 = vector.broadcast %cst_60 : f32 to vector<4x512xf32>
    %155 = arith.subf %154, %134 : vector<4x512xf32>
    %156 = arith.mulf %155, %134 : vector<4x512xf32>
    %157 = math.exp %156 : vector<4x512xf32>
    %158 = arith.mulf %153, %157 : vector<4x512xf32>
    %cst_61 = arith.constant 1.000000e+00 : f32
    %159 = vector.broadcast %cst_61 : f32 to vector<4x512xf32>
    %160 = arith.subf %159, %158 : vector<4x512xf32>
    %cst_62 = arith.constant 0.000000e+00 : f32
    %161 = vector.broadcast %cst_62 : f32 to vector<4x512xf32>
    %162 = arith.cmpf oge, %133, %161 : vector<4x512xf32>
    %cst_63 = arith.constant 0.000000e+00 : f32
    %163 = vector.broadcast %cst_63 : f32 to vector<4x512xf32>
    %164 = arith.subf %163, %160 : vector<4x512xf32>
    %165 = arith.select %162, %160, %164 : vector<4x512xi1>, vector<4x512xf32>
    %cst_64 = arith.constant 1.000000e+00 : f32
    %166 = vector.broadcast %cst_64 : f32 to vector<4x512xf32>
    %167 = arith.addf %166, %165 : vector<4x512xf32>
    %168 = arith.mulf %131, %167 : vector<4x512xf32>
    %c33_i32_65 = arith.constant 33 : i32
    %169 = tpu.dynamic_rotate %168 by %c33_i32_65 dim 1 : vector<4x512xf32>, i32 -> vector<4x512xf32>
    %c0_66 = arith.constant 0 : index
    %c0_67 = arith.constant 0 : index
    %c0_68 = arith.constant 0 : index
    %170 = vector.load %arg4[%c0_66, %c0_67, %c0_68] : memref<9x4x512xf32, #tpu.memory_space<vmem>>, vector<1x4x512xf32>
    %171 = vector.shape_cast %170 : vector<1x4x512xf32> to vector<4x512xf32>
    %172 = arith.mulf %169, %171 : vector<4x512xf32>
    %c32_i32_69 = arith.constant 32 : i32
    %173 = tpu.dynamic_rotate %168 by %c32_i32_69 dim 1 : vector<4x512xf32>, i32 -> vector<4x512xf32>
    %c1_70 = arith.constant 1 : index
    %c0_71 = arith.constant 0 : index
    %c0_72 = arith.constant 0 : index
    %174 = vector.load %arg4[%c1_70, %c0_71, %c0_72] : memref<9x4x512xf32, #tpu.memory_space<vmem>>, vector<1x4x512xf32>
    %175 = vector.shape_cast %174 : vector<1x4x512xf32> to vector<4x512xf32>
    %176 = arith.mulf %173, %175 : vector<4x512xf32>
    %c31_i32_73 = arith.constant 31 : i32
    %177 = tpu.dynamic_rotate %168 by %c31_i32_73 dim 1 : vector<4x512xf32>, i32 -> vector<4x512xf32>
    %c2_74 = arith.constant 2 : index
    %c0_75 = arith.constant 0 : index
    %c0_76 = arith.constant 0 : index
    %178 = vector.load %arg4[%c2_74, %c0_75, %c0_76] : memref<9x4x512xf32, #tpu.memory_space<vmem>>, vector<1x4x512xf32>
    %179 = vector.shape_cast %178 : vector<1x4x512xf32> to vector<4x512xf32>
    %180 = arith.mulf %177, %179 : vector<4x512xf32>
    %c1_i32_77 = arith.constant 1 : i32
    %181 = tpu.dynamic_rotate %168 by %c1_i32_77 dim 1 : vector<4x512xf32>, i32 -> vector<4x512xf32>
    %c3_78 = arith.constant 3 : index
    %c0_79 = arith.constant 0 : index
    %c0_80 = arith.constant 0 : index
    %182 = vector.load %arg4[%c3_78, %c0_79, %c0_80] : memref<9x4x512xf32, #tpu.memory_space<vmem>>, vector<1x4x512xf32>
    %183 = vector.shape_cast %182 : vector<1x4x512xf32> to vector<4x512xf32>
    %184 = arith.mulf %181, %183 : vector<4x512xf32>
    %c511_i32_81 = arith.constant 511 : i32
    %185 = tpu.dynamic_rotate %168 by %c511_i32_81 dim 1 : vector<4x512xf32>, i32 -> vector<4x512xf32>
    %c5_82 = arith.constant 5 : index
    %c0_83 = arith.constant 0 : index
    %c0_84 = arith.constant 0 : index
    %186 = vector.load %arg4[%c5_82, %c0_83, %c0_84] : memref<9x4x512xf32, #tpu.memory_space<vmem>>, vector<1x4x512xf32>
    %187 = vector.shape_cast %186 : vector<1x4x512xf32> to vector<4x512xf32>
    %188 = arith.mulf %185, %187 : vector<4x512xf32>
    %c481_i32_85 = arith.constant 481 : i32
    %189 = tpu.dynamic_rotate %168 by %c481_i32_85 dim 1 : vector<4x512xf32>, i32 -> vector<4x512xf32>
    %c6_86 = arith.constant 6 : index
    %c0_87 = arith.constant 0 : index
    %c0_88 = arith.constant 0 : index
    %190 = vector.load %arg4[%c6_86, %c0_87, %c0_88] : memref<9x4x512xf32, #tpu.memory_space<vmem>>, vector<1x4x512xf32>
    %191 = vector.shape_cast %190 : vector<1x4x512xf32> to vector<4x512xf32>
    %192 = arith.mulf %189, %191 : vector<4x512xf32>
    %c480_i32_89 = arith.constant 480 : i32
    %193 = tpu.dynamic_rotate %168 by %c480_i32_89 dim 1 : vector<4x512xf32>, i32 -> vector<4x512xf32>
    %c7_90 = arith.constant 7 : index
    %c0_91 = arith.constant 0 : index
    %c0_92 = arith.constant 0 : index
    %194 = vector.load %arg4[%c7_90, %c0_91, %c0_92] : memref<9x4x512xf32, #tpu.memory_space<vmem>>, vector<1x4x512xf32>
    %195 = vector.shape_cast %194 : vector<1x4x512xf32> to vector<4x512xf32>
    %196 = arith.mulf %193, %195 : vector<4x512xf32>
    %c479_i32_93 = arith.constant 479 : i32
    %197 = tpu.dynamic_rotate %168 by %c479_i32_93 dim 1 : vector<4x512xf32>, i32 -> vector<4x512xf32>
    %c8_94 = arith.constant 8 : index
    %c0_95 = arith.constant 0 : index
    %c0_96 = arith.constant 0 : index
    %198 = vector.load %arg4[%c8_94, %c0_95, %c0_96] : memref<9x4x512xf32, #tpu.memory_space<vmem>>, vector<1x4x512xf32>
    %199 = vector.shape_cast %198 : vector<1x4x512xf32> to vector<4x512xf32>
    %200 = arith.mulf %197, %199 : vector<4x512xf32>
    %201 = tpu.concatenate %172, %176, %180, %184, %168, %188, %192, %196, %200 in 0 : vector<4x512xf32>, vector<4x512xf32>, vector<4x512xf32>, vector<4x512xf32>, vector<4x512xf32>, vector<4x512xf32>, vector<4x512xf32>, vector<4x512xf32>, vector<4x512xf32> -> vector<36x512xf32>
    %202 = arith.truncf %201 : vector<36x512xf32> to vector<36x512xbf16>
    %c0_97 = arith.constant 0 : index
    %c0_98 = arith.constant 0 : index
    %203 = vector.load %arg7[%c0_97, %c0_98] : memref<4x36xbf16, #tpu.memory_space<vmem>>, vector<4x36xbf16>
    %cst_99 = arith.constant dense<0.000000e+00> : vector<4x512xf32>
    %204 = tpu.matmul %203, %202, %cst_99 {dimension_numbers = #tpu.dot_dimension_numbers<[1], [0], [0], [1], [0, 0, 1, 1], [], []>} : vector<4x36xbf16>, vector<36x512xbf16>, vector<4x512xf32> -> vector<4x512xf32>
    %c0_100 = arith.constant 0 : index
    %c0_101 = arith.constant 0 : index
    %205 = vector.load %arg8[%c0_100, %c0_101] : memref<4x512xf32, #tpu.memory_space<vmem>>, vector<4x512xf32>
    %206 = arith.addf %204, %205 : vector<4x512xf32>
    %207 = arith.addf %206, %0 : vector<4x512xf32>
    %c0_102 = arith.constant 0 : index
    %c0_103 = arith.constant 0 : index
    %208 = vector.load %arg9[%c0_102, %c0_103] : memref<4x512xf32, #tpu.memory_space<vmem>>, vector<4x512xf32>
    tpu.vector_store %arg9[%c0_102, %c0_103], %207 {strides = array<i32>} : memref<4x512xf32, #tpu.memory_space<vmem>>, vector<4x512xf32>,
    return
  }
  func.func @transform_0(%arg0: i32) -> (i32, i32) {
    %c0_i32 = arith.constant 0 : i32
    %c0_i32_0 = arith.constant 0 : i32
    %c0_i32_1 = arith.constant 0 : i32
    return %c0_i32, %c0_i32_0 : i32, i32
  }
  func.func @transform_1(%arg0: i32) -> (i32, i32) {
    %c0_i32 = arith.constant 0 : i32
    %c0_i32_0 = arith.constant 0 : i32
    %c0_i32_1 = arith.constant 0 : i32
    return %c0_i32, %c0_i32_0 : i32, i32
  }
  func.func @transform_2(%arg0: i32) -> (i32, i32) {
    %c0_i32 = arith.constant 0 : i32
    %c0_i32_0 = arith.constant 0 : i32
    %c0_i32_1 = arith.constant 0 : i32
    return %c0_i32, %c0_i32_0 : i32, i32
  }
  func.func @transform_3(%arg0: i32) -> (i32, i32, i32) {
    %c0_i32 = arith.constant 0 : i32
    %c0_i32_0 = arith.constant 0 : i32
    %c0_i32_1 = arith.constant 0 : i32
    %c0_i32_2 = arith.constant 0 : i32
    return %c0_i32, %c0_i32_0, %c0_i32_1 : i32, i32, i32
  }
  func.func @transform_4(%arg0: i32) -> (i32, i32) {
    %c0_i32 = arith.constant 0 : i32
    %c0_i32_0 = arith.constant 0 : i32
    %c0_i32_1 = arith.constant 0 : i32
    return %c0_i32, %c0_i32_0 : i32, i32
  }
  func.func @transform_5(%arg0: i32) -> (i32, i32) {
    %c0_i32 = arith.constant 0 : i32
    %c0_i32_0 = arith.constant 0 : i32
    %c0_i32_1 = arith.constant 0 : i32
    return %c0_i32, %c0_i32_0 : i32, i32
  }
  func.func @transform_6(%arg0: i32) -> (i32, i32) {
    %c0_i32 = arith.constant 0 : i32
    %c0_i32_0 = arith.constant 0 : i32
    %c0_i32_1 = arith.constant 0 : i32
    return %c0_i32, %c0_i32_0 : i32, i32
  }
  func.func @transform_7(%arg0: i32) -> (i32, i32) {
    %c0_i32 = arith.constant 0 : i32
    %c0_i32_0 = arith.constant 0 : i32
    %c0_i32_1 = arith.constant 0 : i32
    return %c0_i32, %c0_i32_0 : i32, i32
  }
  func.func @transform_8(%arg0: i32) -> (i32, i32) {
    %c0_i32 = arith.constant 0 : i32
    %c0_i32_0 = arith.constant 0 : i32
    %c0_i32_1 = arith.constant 0 : i32
    return %c0_i32, %c0_i32_0 : i32, i32
  }
}

</mosaic_0001>

<llo_original>
// kernel: residual_cnn.1
$region0: #{residual_cnn.1}
  #allocation0 [shape = 'u32[]', space=smem, size = 0x4, offset = 0x4, fixed_abs, tag = 'smem constant byte address 0x4 - core index']
  #allocation1 [shape = 'u32[144,128]{1,0:T(1,128)}', space=vmem, size = 0x12000, scoped, tag = 'internal scratch']
  %s0 = inlined_call_operand.vmem [shape: f32[4,512], index: 0, kind: input, shape index: {}]
  %s1 = inlined_call_operand.vmem [shape: f32[4,512], index: 1, kind: input, shape index: {}]
  %s2 = inlined_call_operand.vmem [shape: f32[4,512], index: 2, kind: input, shape index: {}]
  %s3 = inlined_call_operand.vmem [shape: f32[9,4,512], index: 3, kind: input, shape index: {}]
  %s4 = inlined_call_operand.vmem [shape: bf16[4,36], index: 4, kind: input, shape index: {}]
  %s5 = inlined_call_operand.vmem [shape: f32[4,512], index: 5, kind: input, shape index: {}]
  %s6 = inlined_call_operand.vmem [shape: bf16[4,36], index: 6, kind: input, shape index: {}]
  %s7 = inlined_call_operand.vmem [shape: f32[4,512], index: 7, kind: input, shape index: {}]
  %s8 = inlined_call_operand.vmem [shape: f32[4,512], index: 8, kind: output, shape index: {}]
  %s9 = sld [smem:[#allocation0]]
  $region42: #{residual_cnn.1} parent=0
    _
  %s11 = ssub.s32 1, %s9
  %s12 = scalar_select 0, %s11, %s9
  // Predicated region
  $region2: #{residual_cnn.1} parent=0 // pred_check
    _
  $region3: #{residual_cnn.1} parent=0 // pred_check_branch
    %14 = sbr.rel (0) target = $region5
  $region4: #{residual_cnn.1} parent=0 // pred_region
    _
  $region5: #{residual_cnn.1} parent=0 // pred_fallthru
    _
  // Predicated region
  $region6: #{residual_cnn.1} parent=0 // pred_check
    _
  $region7: #{residual_cnn.1} parent=0 // pred_check_branch
    %16 = sbr.rel (0) target = $region9
  $region8: #{residual_cnn.1} parent=0 // pred_region
    _
  $region9: #{residual_cnn.1} parent=0 // pred_fallthru
    _
  // Predicated region
  $region10: #{residual_cnn.1} parent=0 // pred_check
    _
  $region11: #{residual_cnn.1} parent=0 // pred_check_branch
    %18 = sbr.rel (0) target = $region13
  $region12: #{residual_cnn.1} parent=0 // pred_region
    _
  $region13: #{residual_cnn.1} parent=0 // pred_fallthru
    _
  // Predicated region
  $region14: #{residual_cnn.1} parent=0 // pred_check
    _
  $region15: #{residual_cnn.1} parent=0 // pred_check_branch
    %20 = sbr.rel (0) target = $region17
  $region16: #{residual_cnn.1} parent=0 // pred_region
    _
  $region17: #{residual_cnn.1} parent=0 // pred_fallthru
    _
  // Predicated region
  $region18: #{residual_cnn.1} parent=0 // pred_check
    _
  $region19: #{residual_cnn.1} parent=0 // pred_check_branch
    %22 = sbr.rel (0) target = $region21
  $region20: #{residual_cnn.1} parent=0 // pred_region
    _
  $region21: #{residual_cnn.1} parent=0 // pred_fallthru
    _
  // Predicated region
  $region22: #{residual_cnn.1} parent=0 // pred_check
    _
  $region23: #{residual_cnn.1} parent=0 // pred_check_branch
    %24 = sbr.rel (0) target = $region25
  $region24: #{residual_cnn.1} parent=0 // pred_region
    _
  $region25: #{residual_cnn.1} parent=0 // pred_fallthru
    _
  // Predicated region
  $region26: #{residual_cnn.1} parent=0 // pred_check
    _
  $region27: #{residual_cnn.1} parent=0 // pred_check_branch
    %26 = sbr.rel (0) target = $region29
  $region28: #{residual_cnn.1} parent=0 // pred_region
    _
  $region29: #{residual_cnn.1} parent=0 // pred_fallthru
    _
  // Predicated region
  $region30: #{residual_cnn.1} parent=0 // pred_check
    _
  $region31: #{residual_cnn.1} parent=0 // pred_check_branch
    %28 = sbr.rel (0) target = $region33
  $region32: #{residual_cnn.1} parent=0 // pred_region
    _
  $region33: #{residual_cnn.1} parent=0 // pred_fallthru
    _
  %v30 = vld [vmem:[%s0] sm:$0xff]
  %v31 = vld [vmem:[%s0 + $0x8] sm:$0xff]
  %v32 = vld [vmem:[%s1] sm:$0xff]
  %v33 = vld [vmem:[%s1 + $0x8] sm:$0xff]
  %v34 = vld [vmem:[%s2] sm:$0xff]
  %v35 = vld [vmem:[%s2 + $0x8] sm:$0xff]
  %v36 = vmul.f32 %v30, %v30
  %v37 = vmul.f32 %v31, %v31
  %v40 = vcombine.high %v30, %v30
  %v41 = vcombine.high %v31, %v31
  %v46 = vcombine.low %v36, %v36
  %v47 = vcombine.low %v37, %v37
  %vm50 = vcmask 1043456
  %v51 = vsel %vm50, %v30, %v46
  %v52 = vsel %vm50, %v40, %v36
  %v53 = vsel %vm50, %v31, %v47
  %v54 = vsel %vm50, %v41, %v37
  %v55 = vadd.f32 %v51, %v53
  %v56 = vadd.f32 %v52, %v54
  %v57 = vadd.f32 %v55, %v56
  %58 = vrot.lane.b32.xlu0 %v57, 64
  %v59 = vpop.permute.xlu0 %58
  %v60 = vlaneseq
  %v61 = vand.u32 %v60, 127
  %v62 = vadd.f32 %v57, %v59
  %63 = vrot.lane.b32.xlu0 %v62, 32
  %v64 = vpop.permute.xlu0 %63
  %vm65 = vcmp.lt.s32.totalorder %v61, 32
  %v66 = vadd.f32 %v62, %v64
  %v67 = vmul.f32 %v66, 0.0625
  %v68 = vmul.f32 %v67, %v67
  %v70 = vrot.slane %v68, 4
  %v72 = vsub.f32 %v67, %v70
  %v73 = vadd.f32 %v72, 1e-05
  %v74 = vrsqrt.pop %v73
  %v76 = vcombine.low %v67, %v67
  %v78 = vsub.f32 %v30, %v76
  %v79 = vsub.f32 %v31, %v76
  %v81 = vcombine.high %v74, %v74
  %v83 = vmul.f32 %v78, %v81
  %v84 = vmul.f32 %v79, %v81
  %v85 = vmul.f32 %v83, %v32
  %v86 = vmul.f32 %v84, %v33
  %v87 = vadd.f32 %v85, %v34
  %v88 = vadd.f32 %v86, %v35
  %v89 = vmul.f32 %v87, 0.5
  %v90 = vmul.f32 %v88, 0.5
  %v91 = vmul.f32 %v87, 0.70710677
  %v92 = vmul.f32 %v88, 0.70710677
  %v93 = vand.u32 2147483647, %v91
  %v94 = vand.u32 2147483647, %v92
  %v95 = vmul.f32 %v93, 0.3275911
  %v96 = vmul.f32 %v94, 0.3275911
  %v97 = vadd.f32 %v95, 1.0
  %v98 = vadd.f32 %v96, 1.0
  %v99 = vrcp.pop %v97
  %v100 = vrcp.pop %v98
  %v101 = vmul.f32 %v99, 1.0614054
  %v102 = vmul.f32 %v100, 1.0614054
  %v103 = vadd.f32 %v101, -1.4531521
  %v104 = vadd.f32 %v102, -1.4531521
  %v105 = vmul.f32 %v103, %v99
  %v106 = vmul.f32 %v104, %v100
  %v107 = vadd.f32 %v105, 1.4214138
  %v108 = vadd.f32 %v106, 1.4214138
  %v109 = vmul.f32 %v107, %v99
  %v110 = vmul.f32 %v108, %v100
  %v111 = vadd.f32 %v109, -0.28449672
  %v112 = vadd.f32 %v110, -0.28449672
  %v113 = vmul.f32 %v111, %v99
  %v114 = vmul.f32 %v112, %v100
  %v115 = vadd.f32 %v113, 0.2548296
  %v116 = vadd.f32 %v114, 0.2548296
  %v117 = vmul.f32 %v115, %v99
  %v118 = vmul.f32 %v116, %v100
  %v119 = vsub.f32 0.0, %v93
  %v120 = vsub.f32 0.0, %v94
  %v121 = vmul.f32 %v119, %v93
  %v122 = vmul.f32 %v120, %v94
  %v123 = vmul.f32 %v121, 1.442695
  %v124 = vpow.pop %v123
  %v125 = vmul.f32 %v122, 1.442695
  %v126 = vpow.pop %v125
  %v127 = vmul.f32 %v117, %v124
  %v128 = vmul.f32 %v118, %v126
  %v129 = vsub.f32 1.0, %v127
  %v130 = vsub.f32 1.0, %v128
  %vm131 = vcmp.ge.f32.partialorder %v91, 0.0
  %vm132 = vcmp.ge.f32.partialorder %v92, 0.0
  %v133 = vsub.f32 0.0, %v129
  %v134 = vsub.f32 0.0, %v130
  %v135 = vsel %vm131, %v129, %v133
  %v136 = vsel %vm132, %v130, %v134
  %v137 = vadd.f32 %v135, 1.0
  %v138 = vadd.f32 %v136, 1.0
  %v139 = vmul.f32 %v89, %v137
  %v140 = vmul.f32 %v90, %v138
  %v143 = vcombine.high %v139, %v139
  %v144 = vcombine.high %v140, %v140
  %147 = vrot.lane.b32.xlu0 %v139, 33
  %v148 = vpop.permute.xlu0 %147
  %149 = vrot.lane.b32.xlu0 %v143, 33
  %v150 = vpop.permute.xlu0 %149
  %151 = vrot.lane.b32.xlu0 %v140, 33
  %v152 = vpop.permute.xlu0 %151
  %153 = vrot.lane.b32.xlu0 %v144, 33
  %v154 = vpop.permute.xlu0 %153
  %vm155 = vcmp.lt.s32.totalorder %v61, 33
  %v156 = vsel %vm155, %v152, %v154
  %v157 = vsel %vm155, %v150, %v152
  %v158 = vsel %vm155, %v148, %v150
  %v159 = vsel %vm155, %v154, %v148
  %v160 = vld [vmem:[%s3] sm:$0xff]
  %v161 = vld [vmem:[%s3 + $0x8] sm:$0xff]
  %v164 = vcombine.high %v160, %v160
  %v165 = vcombine.high %v161, %v161
  %v168 = vmul.f32 %v159, %v160
  %v169 = vmul.f32 %v158, %v164
  %v170 = vmul.f32 %v157, %v161
  %v171 = vmul.f32 %v156, %v165
  %172 = vrot.lane.b32.xlu0 %v139, 32
  %v173 = vpop.permute.xlu0 %172
  %174 = vrot.lane.b32.xlu0 %v143, 32
  %v175 = vpop.permute.xlu0 %174
  %176 = vrot.lane.b32.xlu0 %v140, 32
  %v177 = vpop.permute.xlu0 %176
  %178 = vrot.lane.b32.xlu0 %v144, 32
  %v179 = vpop.permute.xlu0 %178
  %v180 = vsel %vm65, %v177, %v179
  %v181 = vsel %vm65, %v175, %v177
  %v182 = vsel %vm65, %v173, %v175
  %v183 = vsel %vm65, %v179, %v173
  %s184 = scalar_lea.vmem %s3, 16
  %v185 = vld [vmem:[%s184] sm:$0xff]
  %v186 = vld [vmem:[%s184 + $0x8] sm:$0xff]
  %v189 = vcombine.high %v185, %v185
  %v190 = vcombine.high %v186, %v186
  %v193 = vmul.f32 %v183, %v185
  %v194 = vmul.f32 %v182, %v189
  %v195 = vmul.f32 %v181, %v186
  %v196 = vmul.f32 %v180, %v190
  %197 = vrot.lane.b32.xlu0 %v139, 31
  %v198 = vpop.permute.xlu0 %197
  %199 = vrot.lane.b32.xlu0 %v143, 31
  %v200 = vpop.permute.xlu0 %199
  %201 = vrot.lane.b32.xlu0 %v140, 31
  %v202 = vpop.permute.xlu0 %201
  %203 = vrot.lane.b32.xlu0 %v144, 31
  %v204 = vpop.permute.xlu0 %203
  %vm205 = vcmp.lt.s32.totalorder %v61, 31
  %v206 = vsel %vm205, %v202, %v204
  %v207 = vsel %vm205, %v200, %v202
  %v208 = vsel %vm205, %v198, %v200
  %v209 = vsel %vm205, %v204, %v198
  %s210 = scalar_lea.vmem %s3, 32
  %v211 = vld [vmem:[%s210] sm:$0xff]
  %v212 = vld [vmem:[%s210 + $0x8] sm:$0xff]
  %v215 = vcombine.high %v211, %v211
  %v216 = vcombine.high %v212, %v212
  %v219 = vmul.f32 %v209, %v211
  %v220 = vmul.f32 %v208, %v215
  %v221 = vmul.f32 %v207, %v212
  %v222 = vmul.f32 %v206, %v216
  %223 = vrot.lane.b32.xlu0 %v139, 1
  %v224 = vpop.permute.xlu0 %223
  %225 = vrot.lane.b32.xlu0 %v143, 1
  %v226 = vpop.permute.xlu0 %225
  %227 = vrot.lane.b32.xlu0 %v140, 1
  %v228 = vpop.permute.xlu0 %227
  %229 = vrot.lane.b32.xlu0 %v144, 1
  %v230 = vpop.permute.xlu0 %229
  %vm231 = vcmp.lt.s32.totalorder %v61, 1
  %v232 = vsel %vm231, %v228, %v230
  %v233 = vsel %vm231, %v226, %v228
  %v234 = vsel %vm231, %v224, %v226
  %v235 = vsel %vm231, %v230, %v224
  %s236 = scalar_lea.vmem %s3, 48
  %v237 = vld [vmem:[%s236] sm:$0xff]
  %v238 = vld [vmem:[%s236 + $0x8] sm:$0xff]
  %v241 = vcombine.high %v237, %v237
  %v242 = vcombine.high %v238, %v238
  %v245 = vmul.f32 %v235, %v237
  %v246 = vmul.f32 %v234, %v241
  %v247 = vmul.f32 %v233, %v238
  %v248 = vmul.f32 %v232, %v242
  %249 = vrot.lane.b32.xlu0 %v139, 127
  %v250 = vpop.permute.xlu0 %249
  %251 = vrot.lane.b32.xlu0 %v143, 127
  %v252 = vpop.permute.xlu0 %251
  %253 = vrot.lane.b32.xlu0 %v140, 127
  %v254 = vpop.permute.xlu0 %253
  %255 = vrot.lane.b32.xlu0 %v144, 127
  %v256 = vpop.permute.xlu0 %255
  %vm257 = vcmp.lt.s32.totalorder %v61, 127
  %v258 = vsel %vm257, %v254, %v256
  %v259 = vsel %vm257, %v252, %v254
  %v260 = vsel %vm257, %v250, %v252
  %v261 = vsel %vm257, %v256, %v250
  %s262 = scalar_lea.vmem %s3, 80
  %v263 = vld [vmem:[%s262] sm:$0xff]
  %v264 = vld [vmem:[%s262 + $0x8] sm:$0xff]
  %v267 = vcombine.high %v263, %v263
  %v268 = vcombine.high %v264, %v264
  %v271 = vmul.f32 %v260, %v263
  %v272 = vmul.f32 %v259, %v267
  %v273 = vmul.f32 %v258, %v264
  %v274 = vmul.f32 %v261, %v268
  %275 = vrot.lane.b32.xlu0 %v139, 97
  %v276 = vpop.permute.xlu0 %275
  %277 = vrot.lane.b32.xlu0 %v143, 97
  %v278 = vpop.permute.xlu0 %277
  %279 = vrot.lane.b32.xlu0 %v140, 97
  %v280 = vpop.permute.xlu0 %279
  %281 = vrot.lane.b32.xlu0 %v144, 97
  %v282 = vpop.permute.xlu0 %281
  %vm283 = vcmp.lt.s32.totalorder %v61, 97
  %v284 = vsel %vm283, %v280, %v282
  %v285 = vsel %vm283, %v278, %v280
  %v286 = vsel %vm283, %v276, %v278
  %v287 = vsel %vm283, %v282, %v276
  %s288 = scalar_lea.vmem %s3, 96
  %v289 = vld [vmem:[%s288] sm:$0xff]
  %v290 = vld [vmem:[%s288 + $0x8] sm:$0xff]
  %v293 = vcombine.high %v289, %v289
  %v294 = vcombine.high %v290, %v290
  %v297 = vmul.f32 %v286, %v289
  %v298 = vmul.f32 %v285, %v293
  %v299 = vmul.f32 %v284, %v290
  %v300 = vmul.f32 %v287, %v294
  %301 = vrot.lane.b32.xlu0 %v139, 96
  %v302 = vpop.permute.xlu0 %301
  %303 = vrot.lane.b32.xlu0 %v143, 96
  %v304 = vpop.permute.xlu0 %303
  %305 = vrot.lane.b32.xlu0 %v140, 96
  %v306 = vpop.permute.xlu0 %305
  %307 = vrot.lane.b32.xlu0 %v144, 96
  %v308 = vpop.permute.xlu0 %307
  %vm309 = vcmp.lt.s32.totalorder %v61, 96
  %v310 = vsel %vm309, %v306, %v308
  %v311 = vsel %vm309, %v304, %v306
  %v312 = vsel %vm309, %v302, %v304
  %v313 = vsel %vm309, %v308, %v302
  %s314 = scalar_lea.vmem %s3, 112
  %v315 = vld [vmem:[%s314] sm:$0xff]
  %v316 = vld [vmem:[%s314 + $0x8] sm:$0xff]
  %v319 = vcombine.high %v315, %v315
  %v320 = vcombine.high %v316, %v316
  %v323 = vmul.f32 %v312, %v315
  %v324 = vmul.f32 %v311, %v319
  %v325 = vmul.f32 %v310, %v316
  %v326 = vmul.f32 %v313, %v320
  %327 = vrot.lane.b32.xlu0 %v139, 95
  %v328 = vpop.permute.xlu0 %327
  %329 = vrot.lane.b32.xlu0 %v143, 95
  %v330 = vpop.permute.xlu0 %329
  %331 = vrot.lane.b32.xlu0 %v140, 95
  %v332 = vpop.permute.xlu0 %331
  %333 = vrot.lane.b32.xlu0 %v144, 95
  %v334 = vpop.permute.xlu0 %333
  %vm335 = vcmp.lt.s32.totalorder %v61, 95
  %v336 = vsel %vm335, %v332, %v334
  %v337 = vsel %vm335, %v330, %v332
  %v338 = vsel %vm335, %v328, %v330
  %v339 = vsel %vm335, %v334, %v328
  %s340 = scalar_lea.vmem %s3, 128
  %v341 = vld [vmem:[%s340] sm:$0xff]
  %v342 = vld [vmem:[%s340 + $0x8] sm:$0xff]
  %v345 = vcombine.high %v341, %v341
  %v346 = vcombine.high %v342, %v342
  %v349 = vmul.f32 %v338, %v341
  %v350 = vmul.f32 %v337, %v345
  %v351 = vmul.f32 %v336, %v342
  %v352 = vmul.f32 %v339, %v346
  %v357 = vrot.slane %v193, 4
  %v358 = vrot.slane %v194, 4
  %v359 = vrot.slane %v195, 4
  %v360 = vrot.slane %v196, 4
  %v369 = vrot.slane %v245, 4
  %v370 = vrot.slane %v246, 4
  %v371 = vrot.slane %v247, 4
  %v372 = vrot.slane %v248, 4
  %v381 = vrot.slane %v271, 4
  %v382 = vrot.slane %v272, 4
  %v383 = vrot.slane %v273, 4
  %v384 = vrot.slane %v274, 4
  %v393 = vrot.slane %v323, 4
  %v394 = vrot.slane %v324, 4
  %v395 = vrot.slane %v325, 4
  %v396 = vrot.slane %v326, 4
  %v401 = vsel %vm50, %v168, %v357
  %v402 = vsel %vm50, %v169, %v358
  %v403 = vsel %vm50, %v170, %v359
  %v404 = vsel %vm50, %v171, %v360
  %v405 = vsel %vm50, %v219, %v369
  %v406 = vsel %vm50, %v220, %v370
  %v407 = vsel %vm50, %v221, %v371
  %v408 = vsel %vm50, %v222, %v372
  %v409 = vsel %vm50, %v139, %v381
  %v410 = vsel %vm50, %v143, %v382
  %v411 = vsel %vm50, %v140, %v383
  %v412 = vsel %vm50, %v144, %v384
  %v413 = vsel %vm50, %v297, %v393
  %v414 = vsel %vm50, %v298, %v394
  %v415 = vsel %vm50, %v299, %v395
  %v416 = vsel %vm50, %v300, %v396
  %v417 = vpack.c.bf16 %v405, %v401
  %v418 = vpack.c.bf16 %v406, %v402
  %v419 = vpack.c.bf16 %v407, %v403
  %v420 = vpack.c.bf16 %v408, %v404
  %v421 = vpack.c.bf16 %v413, %v409
  %v422 = vpack.c.bf16 %v414, %v410
  %v423 = vpack.c.bf16 %v415, %v411
  %v424 = vpack.c.bf16 %v416, %v412
  %v425 = vpack.c.bf16 %v349, %v349
  %v426 = vpack.c.bf16 %v350, %v350
  %v427 = vpack.c.bf16 %v351, %v351
  %v428 = vpack.c.bf16 %v352, %v352
  %v429 = vld [vmem:[%s4] sm:$0x3]
  %v430 = vld [vmem:[%s5] sm:$0xff]
  %v431 = vld [vmem:[%s5 + $0x8] sm:$0xff]
  %v434 = vcombine.high %v430, %v430
  %v435 = vcombine.high %v431, %v431
  %vm438 = vcmask 293888
  %v440 = vsel %vm438, %v429, 0
  %vm442 = vcmask 1041408
  %v444 = vsel %vm442, %v425, 0
  %v447 = vsel %vm442, %v426, 0
  %v450 = vsel %vm442, %v427, 0
  %v453 = vsel %vm442, %v428, 0
  %455 = vmatprep.subr.bf16.mxu0 %v418
  %456 = vmatpush1.bf16.msra.mxu0 %v417
  %457 = vmatprep.subr.bf16.mxu0 %v422
  %458 = vmatpush1.bf16.msra.mxu0 %v421
  %459 = vmatprep.subr.bf16.mxu0 %v447
  %460 = vmatpush1.bf16.msra.mxu0 %v444
  %461 = vmatprep.subr.bf16.mxu0 0
  %462 = vmatpush1.bf16.msra.mxu0 0
  %463 = vmatprep.subr.bf16.mxu0 0
  %464 = vmatpush1.bf16.msra.mxu0 0
  %465 = vmatprep.subr.bf16.mxu0 0
  %466 = vmatpush1.bf16.msra.mxu0 0
  %467 = vmatprep.subr.bf16.mxu0 0
  %468 = vmatpush1.bf16.msra.mxu0 0
  %469 = vmatprep.subr.bf16.mxu0 0
  %470 = vmatpush1.bf16.msra.mxu0 0
  %471 = vmatprep.subr.bf16.mxu0 0
  %472 = vmatpush1.bf16.msra.mxu0 0
  %473 = vmatprep.subr.bf16.mxu0 0
  %474 = vmatpush1.bf16.msra.mxu0 0
  %475 = vmatprep.subr.bf16.mxu0 0
  %476 = vmatpush1.bf16.msra.mxu0 0
  %477 = vmatprep.subr.bf16.mxu0 0
  %478 = vmatpush1.bf16.msra.mxu0 0
  %479 = vmatprep.subr.bf16.mxu0 0
  %480 = vmatpush1.bf16.msra.mxu0 0
  %481 = vmatprep.subr.bf16.mxu0 0
  %482 = vmatpush1.bf16.msra.mxu0 0
  %483 = vmatprep.subr.bf16.mxu0 0
  %484 = vmatpush1.bf16.msra.mxu0 0
  %485 = vmatprep.subr.bf16.mxu0 0
  %486 = vmatpush1.bf16.msra.mxu0 0
  %487 = vmatprep.mubr.bf16.mxu0 0
  %488 = vmatmul.mubr.bf16.gmra.mrb[0].mxu0 %v440
  %v489 = vpop.f32.mrb[0].mxu0
  %v490 = vadd.f32 %v430, %v489
  %v491 = vpop.f32.mrb[0].mxu0
  %v492 = vadd.f32 %v434, %v491
  %v493 = vpop.f32.mrb[0].mxu0
  %v494 = vpop.f32.mrb[0].mxu0
  %495 = vdwg.mxu0
  %496 = vmatprep.subr.bf16.mxu0 %v420
  %497 = vmatpush1.bf16.msra.mxu0 %v419
  %498 = vmatprep.subr.bf16.mxu0 %v424
  %499 = vmatpush1.bf16.msra.mxu0 %v423
  %500 = vmatprep.subr.bf16.mxu0 %v453
  %501 = vmatpush1.bf16.msra.mxu0 %v450
  %502 = vmatprep.subr.bf16.mxu0 0
  %503 = vmatpush1.bf16.msra.mxu0 0
  %504 = vmatprep.subr.bf16.mxu0 0
  %505 = vmatpush1.bf16.msra.mxu0 0
  %506 = vmatprep.subr.bf16.mxu0 0
  %507 = vmatpush1.bf16.msra.mxu0 0
  %508 = vmatprep.subr.bf16.mxu0 0
  %509 = vmatpush1.bf16.msra.mxu0 0
  %510 = vmatprep.subr.bf16.mxu0 0
  %511 = vmatpush1.bf16.msra.mxu0 0
  %512 = vmatprep.subr.bf16.mxu0 0
  %513 = vmatpush1.bf16.msra.mxu0 0
  %514 = vmatprep.subr.bf16.mxu0 0
  %515 = vmatpush1.bf16.msra.mxu0 0
  %516 = vmatprep.subr.bf16.mxu0 0
  %517 = vmatpush1.bf16.msra.mxu0 0
  %518 = vmatprep.subr.bf16.mxu0 0
  %519 = vmatpush1.bf16.msra.mxu0 0
  %520 = vmatprep.subr.bf16.mxu0 0
  %521 = vmatpush1.bf16.msra.mxu0 0
  %522 = vmatprep.subr.bf16.mxu0 0
  %523 = vmatpush1.bf16.msra.mxu0 0
  %524 = vmatprep.subr.bf16.mxu0 0
  %525 = vmatpush1.bf16.msra.mxu0 0
  %526 = vmatprep.subr.bf16.mxu0 0
  %527 = vmatpush1.bf16.msra.mxu0 0
  %528 = vmatprep.mubr.bf16.mxu0 0
  %529 = vmatmul.mubr.bf16.gmra.mrb[0].mxu0 %v440
  %v530 = vpop.f32.mrb[0].mxu0
  %v531 = vadd.f32 %v431, %v530
  %v532 = vpop.f32.mrb[0].mxu0
  %v533 = vadd.f32 %v435, %v532
  %v534 = vpop.f32.mrb[0].mxu0
  %v535 = vpop.f32.mrb[0].mxu0
  %536 = vdwg.mxu0
  %v537 = vmul.f32 %v490, %v490
  %v538 = vmul.f32 %v492, %v492
  %v539 = vmul.f32 %v531, %v531
  %v540 = vmul.f32 %v533, %v533
  %v545 = vrot.slane %v537, 4
  %v546 = vrot.slane %v538, 4
  %v547 = vrot.slane %v539, 4
  %v548 = vrot.slane %v540, 4
  %v553 = vsel %vm50, %v490, %v545
  %v554 = vsel %vm50, %v492, %v546
  %v555 = vsel %vm50, %v531, %v547
  %v556 = vsel %vm50, %v533, %v548
  %v557 = vadd.f32 %v553, %v555
  %v558 = vadd.f32 %v554, %v556
  %v559 = vadd.f32 %v557, %v558
  %560 = vrot.lane.b32.xlu0 %v559, 64
  %v561 = vpop.permute.xlu0 %560
  %v562 = vadd.f32 %v559, %v561
  %563 = vrot.lane.b32.xlu0 %v562, 32
  %v564 = vpop.permute.xlu0 %563
  %v565 = vadd.f32 %v562, %v564
  %v566 = vmul.f32 %v565, 0.0625
  %v567 = vmul.f32 %v566, %v566
  %v569 = vrot.slane %v567, 4
  %v571 = vsub.f32 %v566, %v569
  %v572 = vadd.f32 %v571, 1e-05
  %v573 = vrsqrt.pop %v572
  %v574 = vsub.f32 %v490, %v566
  %v575 = vsub.f32 %v492, %v566
  %v576 = vsub.f32 %v531, %v566
  %v577 = vsub.f32 %v533, %v566
  %v579 = vrot.slane %v573, 4
  %v581 = vmul.f32 %v574, %v579
  %v582 = vmul.f32 %v575, %v579
  %v583 = vmul.f32 %v576, %v579
  %v584 = vmul.f32 %v577, %v579
  %v587 = vcombine.high %v32, %v32
  %v588 = vcombine.high %v33, %v33
  %v591 = vmul.f32 %v581, %v32
  %v592 = vmul.f32 %v582, %v587
  %v593 = vmul.f32 %v583, %v33
  %v594 = vmul.f32 %v584, %v588
  %v597 = vcombine.high %v34, %v34
  %v598 = vcombine.high %v35, %v35
  %v601 = vadd.f32 %v591, %v34
  %v602 = vadd.f32 %v592, %v597
  %v603 = vadd.f32 %v593, %v35
  %v604 = vadd.f32 %v594, %v598
  %v605 = vmul.f32 %v601, 0.5
  %v606 = vmul.f32 %v602, 0.5
  %v607 = vmul.f32 %v603, 0.5
  %v608 = vmul.f32 %v604, 0.5
  %v609 = vmul.f32 %v601, 0.70710677
  %v610 = vmul.f32 %v602, 0.70710677
  %v611 = vmul.f32 %v603, 0.70710677
  %v612 = vmul.f32 %v604, 0.70710677
  %v613 = vand.u32 2147483647, %v609
  %v614 = vand.u32 2147483647, %v610
  %v615 = vand.u32 2147483647, %v611
  %v616 = vand.u32 2147483647, %v612
  %v617 = vmul.f32 %v613, 0.3275911
  %v618 = vmul.f32 %v614, 0.3275911
  %v619 = vmul.f32 %v615, 0.3275911
  %v620 = vmul.f32 %v616, 0.3275911
  %v621 = vadd.f32 %v617, 1.0
  %v622 = vadd.f32 %v618, 1.0
  %v623 = vadd.f32 %v619, 1.0
  %v624 = vadd.f32 %v620, 1.0
  %v625 = vrcp.pop %v621
  %v626 = vrcp.pop %v622
  %v627 = vrcp.pop %v623
  %v628 = vrcp.pop %v624
  %v629 = vmul.f32 %v625, 1.0614054
  %v630 = vmul.f32 %v626, 1.0614054
  %v631 = vmul.f32 %v627, 1.0614054
  %v632 = vmul.f32 %v628, 1.0614054
  %v633 = vadd.f32 %v629, -1.4531521
  %v634 = vadd.f32 %v630, -1.4531521
  %v635 = vadd.f32 %v631, -1.4531521
  %v636 = vadd.f32 %v632, -1.4531521
  %v637 = vmul.f32 %v633, %v625
  %v638 = vmul.f32 %v634, %v626
  %v639 = vmul.f32 %v635, %v627
  %v640 = vmul.f32 %v636, %v628
  %v641 = vadd.f32 %v637, 1.4214138
  %v642 = vadd.f32 %v638, 1.4214138
  %v643 = vadd.f32 %v639, 1.4214138
  %v644 = vadd.f32 %v640, 1.4214138
  %v645 = vmul.f32 %v641, %v625
  %v646 = vmul.f32 %v642, %v626
  %v647 = vmul.f32 %v643, %v627
  %v648 = vmul.f32 %v644, %v628
  %v649 = vadd.f32 %v645, -0.28449672
  %v650 = vadd.f32 %v646, -0.28449672
  %v651 = vadd.f32 %v647, -0.28449672
  %v652 = vadd.f32 %v648, -0.28449672
  %v653 = vmul.f32 %v649, %v625
  %v654 = vmul.f32 %v650, %v626
  %v655 = vmul.f32 %v651, %v627
  %v656 = vmul.f32 %v652, %v628
  %v657 = vadd.f32 %v653, 0.2548296
  %v658 = vadd.f32 %v654, 0.2548296
  %v659 = vadd.f32 %v655, 0.2548296
  %v660 = vadd.f32 %v656, 0.2548296
  %v661 = vmul.f32 %v657, %v625
  %v662 = vmul.f32 %v658, %v626
  %v663 = vmul.f32 %v659, %v627
  %v664 = vmul.f32 %v660, %v628
  %v665 = vsub.f32 0.0, %v613
  %v666 = vsub.f32 0.0, %v614
  %v667 = vsub.f32 0.0, %v615
  %v668 = vsub.f32 0.0, %v616
  %v669 = vmul.f32 %v665, %v613
  %v670 = vmul.f32 %v666, %v614
  %v671 = vmul.f32 %v667, %v615
  %v672 = vmul.f32 %v668, %v616
  %v673 = vmul.f32 %v669, 1.442695
  %v674 = vpow.pop %v673
  %v675 = vmul.f32 %v670, 1.442695
  %v676 = vpow.pop %v675
  %v677 = vmul.f32 %v671, 1.442695
  %v678 = vpow.pop %v677
  %v679 = vmul.f32 %v672, 1.442695
  %v680 = vpow.pop %v679
  %v681 = vmul.f32 %v661, %v674
  %v682 = vmul.f32 %v662, %v676
  %v683 = vmul.f32 %v663, %v678
  %v684 = vmul.f32 %v664, %v680
  %v685 = vsub.f32 1.0, %v681
  %v686 = vsub.f32 1.0, %v682
  %v687 = vsub.f32 1.0, %v683
  %v688 = vsub.f32 1.0, %v684
  %vm689 = vcmp.ge.f32.partialorder %v609, 0.0
  %vm690 = vcmp.ge.f32.partialorder %v610, 0.0
  %vm691 = vcmp.ge.f32.partialorder %v611, 0.0
  %vm692 = vcmp.ge.f32.partialorder %v612, 0.0
  %v693 = vsub.f32 0.0, %v685
  %v694 = vsub.f32 0.0, %v686
  %v695 = vsub.f32 0.0, %v687
  %v696 = vsub.f32 0.0, %v688
  %v697 = vsel %vm689, %v685, %v693
  %v698 = vsel %vm690, %v686, %v694
  %v699 = vsel %vm691, %v687, %v695
  %v700 = vsel %vm692, %v688, %v696
  %v701 = vadd.f32 %v697, 1.0
  %v702 = vadd.f32 %v698, 1.0
  %v703 = vadd.f32 %v699, 1.0
  %v704 = vadd.f32 %v700, 1.0
  %v705 = vmul.f32 %v605, %v701
  %v706 = vmul.f32 %v606, %v702
  %v707 = vmul.f32 %v607, %v703
  %v708 = vmul.f32 %v608, %v704
  %709 = vrot.lane.b32.xlu0 %v705, 33
  %v710 = vpop.permute.xlu0 %709
  %711 = vrot.lane.b32.xlu0 %v706, 33
  %v712 = vpop.permute.xlu0 %711
  %713 = vrot.lane.b32.xlu0 %v707, 33
  %v714 = vpop.permute.xlu0 %713
  %715 = vrot.lane.b32.xlu0 %v708, 33
  %v716 = vpop.permute.xlu0 %715
  %v717 = vsel %vm155, %v714, %v716
  %v718 = vsel %vm155, %v712, %v714
  %v719 = vsel %vm155, %v710, %v712
  %v720 = vsel %vm155, %v716, %v710
  %v721 = vmul.f32 %v720, %v160
  %v722 = vmul.f32 %v719, %v164
  %v723 = vmul.f32 %v718, %v161
  %v724 = vmul.f32 %v717, %v165
  %725 = vrot.lane.b32.xlu0 %v705, 32
  %v726 = vpop.permute.xlu0 %725
  %727 = vrot.lane.b32.xlu0 %v706, 32
  %v728 = vpop.permute.xlu0 %727
  %729 = vrot.lane.b32.xlu0 %v707, 32
  %v730 = vpop.permute.xlu0 %729
  %731 = vrot.lane.b32.xlu0 %v708, 32
  %v732 = vpop.permute.xlu0 %731
  %v733 = vsel %vm65, %v730, %v732
  %v734 = vsel %vm65, %v728, %v730
  %v735 = vsel %vm65, %v726, %v728
  %v736 = vsel %vm65, %v732, %v726
  %v737 = vmul.f32 %v736, %v185
  %v738 = vmul.f32 %v735, %v189
  %v739 = vmul.f32 %v734, %v186
  %v740 = vmul.f32 %v733, %v190
  %741 = vrot.lane.b32.xlu0 %v705, 31
  %v742 = vpop.permute.xlu0 %741
  %743 = vrot.lane.b32.xlu0 %v706, 31
  %v744 = vpop.permute.xlu0 %743
  %745 = vrot.lane.b32.xlu0 %v707, 31
  %v746 = vpop.permute.xlu0 %745
  %747 = vrot.lane.b32.xlu0 %v708, 31
  %v748 = vpop.permute.xlu0 %747
  %v749 = vsel %vm205, %v746, %v748
  %v750 = vsel %vm205, %v744, %v746
  %v751 = vsel %vm205, %v742, %v744
  %v752 = vsel %vm205, %v748, %v742
  %v753 = vmul.f32 %v752, %v211
  %v754 = vmul.f32 %v751, %v215
  %v755 = vmul.f32 %v750, %v212
  %v756 = vmul.f32 %v749, %v216
  %757 = vrot.lane.b32.xlu0 %v705, 1
  %v758 = vpop.permute.xlu0 %757
  %759 = vrot.lane.b32.xlu0 %v706, 1
  %v760 = vpop.permute.xlu0 %759
  %761 = vrot.lane.b32.xlu0 %v707, 1
  %v762 = vpop.permute.xlu0 %761
  %763 = vrot.lane.b32.xlu0 %v708, 1
  %v764 = vpop.permute.xlu0 %763
  %v765 = vsel %vm231, %v762, %v764
  %v766 = vsel %vm231, %v760, %v762
  %v767 = vsel %vm231, %v758, %v760
  %v768 = vsel %vm231, %v764, %v758
  %v769 = vmul.f32 %v768, %v237
  %v770 = vmul.f32 %v767, %v241
  %v771 = vmul.f32 %v766, %v238
  %v772 = vmul.f32 %v765, %v242
  %773 = vrot.lane.b32.xlu0 %v705, 127
  %v774 = vpop.permute.xlu0 %773
  %775 = vrot.lane.b32.xlu0 %v706, 127
  %v776 = vpop.permute.xlu0 %775
  %777 = vrot.lane.b32.xlu0 %v707, 127
  %v778 = vpop.permute.xlu0 %777
  %779 = vrot.lane.b32.xlu0 %v708, 127
  %v780 = vpop.permute.xlu0 %779
  %v781 = vsel %vm257, %v778, %v780
  %v782 = vsel %vm257, %v776, %v778
  %v783 = vsel %vm257, %v774, %v776
  %v784 = vsel %vm257, %v780, %v774
  %v785 = vmul.f32 %v783, %v263
  %v786 = vmul.f32 %v782, %v267
  %v787 = vmul.f32 %v781, %v264
  %v788 = vmul.f32 %v784, %v268
  %789 = vrot.lane.b32.xlu0 %v705, 97
  %v790 = vpop.permute.xlu0 %789
  %791 = vrot.lane.b32.xlu0 %v706, 97
  %v792 = vpop.permute.xlu0 %791
  %793 = vrot.lane.b32.xlu0 %v707, 97
  %v794 = vpop.permute.xlu0 %793
  %795 = vrot.lane.b32.xlu0 %v708, 97
  %v796 = vpop.permute.xlu0 %795
  %v797 = vsel %vm283, %v794, %v796
  %v798 = vsel %vm283, %v792, %v794
  %v799 = vsel %vm283, %v790, %v792
  %v800 = vsel %vm283, %v796, %v790
  %v801 = vmul.f32 %v799, %v289
  %v802 = vmul.f32 %v798, %v293
  %v803 = vmul.f32 %v797, %v290
  %v804 = vmul.f32 %v800, %v294
  %805 = vrot.lane.b32.xlu0 %v705, 96
  %v806 = vpop.permute.xlu0 %805
  %807 = vrot.lane.b32.xlu0 %v706, 96
  %v808 = vpop.permute.xlu0 %807
  %809 = vrot.lane.b32.xlu0 %v707, 96
  %v810 = vpop.permute.xlu0 %809
  %811 = vrot.lane.b32.xlu0 %v708, 96
  %v812 = vpop.permute.xlu0 %811
  %v813 = vsel %vm309, %v810, %v812
  %v814 = vsel %vm309, %v808, %v810
  %v815 = vsel %vm309, %v806, %v808
  %v816 = vsel %vm309, %v812, %v806
  %v817 = vmul.f32 %v815, %v315
  %v818 = vmul.f32 %v814, %v319
  %v819 = vmul.f32 %v813, %v316
  %v820 = vmul.f32 %v816, %v320
  %821 = vrot.lane.b32.xlu0 %v705, 95
  %v822 = vpop.permute.xlu0 %821
  %823 = vrot.lane.b32.xlu0 %v706, 95
  %v824 = vpop.permute.xlu0 %823
  %825 = vrot.lane.b32.xlu0 %v707, 95
  %v826 = vpop.permute.xlu0 %825
  %827 = vrot.lane.b32.xlu0 %v708, 95
  %v828 = vpop.permute.xlu0 %827
  %v829 = vsel %vm335, %v826, %v828
  %v830 = vsel %vm335, %v824, %v826
  %v831 = vsel %vm335, %v822, %v824
  %v832 = vsel %vm335, %v828, %v822
  %v833 = vmul.f32 %v831, %v341
  %v834 = vmul.f32 %v830, %v345
  %v835 = vmul.f32 %v829, %v342
  %v836 = vmul.f32 %v832, %v346
  %v841 = vrot.slane %v737, 4
  %v842 = vrot.slane %v738, 4
  %v843 = vrot.slane %v739, 4
  %v844 = vrot.slane %v740, 4
  %v853 = vrot.slane %v769, 4
  %v854 = vrot.slane %v770, 4
  %v855 = vrot.slane %v771, 4
  %v856 = vrot.slane %v772, 4
  %v865 = vrot.slane %v785, 4
  %v866 = vrot.slane %v786, 4
  %v867 = vrot.slane %v787, 4
  %v868 = vrot.slane %v788, 4
  %v877 = vrot.slane %v817, 4
  %v878 = vrot.slane %v818, 4
  %v879 = vrot.slane %v819, 4
  %v880 = vrot.slane %v820, 4
  %v885 = vsel %vm50, %v721, %v841
  %v886 = vsel %vm50, %v722, %v842
  %v887 = vsel %vm50, %v723, %v843
  %v888 = vsel %vm50, %v724, %v844
  %v889 = vsel %vm50, %v753, %v853
  %v890 = vsel %vm50, %v754, %v854
  %v891 = vsel %vm50, %v755, %v855
  %v892 = vsel %vm50, %v756, %v856
  %v893 = vsel %vm50, %v705, %v865
  %v894 = vsel %vm50, %v706, %v866
  %v895 = vsel %vm50, %v707, %v867
  %v896 = vsel %vm50, %v708, %v868
  %v897 = vsel %vm50, %v801, %v877
  %v898 = vsel %vm50, %v802, %v878
  %v899 = vsel %vm50, %v803, %v879
  %v900 = vsel %vm50, %v804, %v880
  %v901 = vpack.c.bf16 %v889, %v885
  %v902 = vpack.c.bf16 %v890, %v886
  %v903 = vpack.c.bf16 %v891, %v887
  %v904 = vpack.c.bf16 %v892, %v888
  %v905 = vpack.c.bf16 %v897, %v893
  %v906 = vpack.c.bf16 %v898, %v894
  %v907 = vpack.c.bf16 %v899, %v895
  %v908 = vpack.c.bf16 %v900, %v896
  %v909 = vpack.c.bf16 %v833, %v833
  %v910 = vpack.c.bf16 %v834, %v834
  %v911 = vpack.c.bf16 %v835, %v835
  %v912 = vpack.c.bf16 %v836, %v836
  %v913 = vld [vmem:[%s6] sm:$0x3]
  %v914 = vld [vmem:[%s7] sm:$0xff]
  %v915 = vld [vmem:[%s7 + $0x8] sm:$0xff]
  %v918 = vcombine.high %v914, %v914
  %v919 = vcombine.high %v915, %v915
  %v923 = vsel %vm438, %v913, 0
  %v926 = vsel %vm442, %v909, 0
  %v929 = vsel %vm442, %v910, 0
  %v932 = vsel %vm442, %v911, 0
  %v935 = vsel %vm442, %v912, 0
  %937 = vmatprep.subr.bf16.mxu0 %v902
  %938 = vmatpush1.bf16.msra.mxu0 %v901
  %939 = vmatprep.subr.bf16.mxu0 %v906
  %940 = vmatpush1.bf16.msra.mxu0 %v905
  %941 = vmatprep.subr.bf16.mxu0 %v929
  %942 = vmatpush1.bf16.msra.mxu0 %v926
  %943 = vmatprep.subr.bf16.mxu0 0
  %944 = vmatpush1.bf16.msra.mxu0 0
  %945 = vmatprep.subr.bf16.mxu0 0
  %946 = vmatpush1.bf16.msra.mxu0 0
  %947 = vmatprep.subr.bf16.mxu0 0
  %948 = vmatpush1.bf16.msra.mxu0 0
  %949 = vmatprep.subr.bf16.mxu0 0
  %950 = vmatpush1.bf16.msra.mxu0 0
  %951 = vmatprep.subr.bf16.mxu0 0
  %952 = vmatpush1.bf16.msra.mxu0 0
  %953 = vmatprep.subr.bf16.mxu0 0
  %954 = vmatpush1.bf16.msra.mxu0 0
  %955 = vmatprep.subr.bf16.mxu0 0
  %956 = vmatpush1.bf16.msra.mxu0 0
  %957 = vmatprep.subr.bf16.mxu0 0
  %958 = vmatpush1.bf16.msra.mxu0 0
  %959 = vmatprep.subr.bf16.mxu0 0
  %960 = vmatpush1.bf16.msra.mxu0 0
  %961 = vmatprep.subr.bf16.mxu0 0
  %962 = vmatpush1.bf16.msra.mxu0 0
  %963 = vmatprep.subr.bf16.mxu0 0
  %964 = vmatpush1.bf16.msra.mxu0 0
  %965 = vmatprep.subr.bf16.mxu0 0
  %966 = vmatpush1.bf16.msra.mxu0 0
  %967 = vmatprep.subr.bf16.mxu0 0
  %968 = vmatpush1.bf16.msra.mxu0 0
  %969 = vmatprep.mubr.bf16.mxu0 0
  %970 = vmatmul.mubr.bf16.gmra.mrb[0].mxu0 %v923
  %v971 = vpop.f32.mrb[0].mxu0
  %v972 = vadd.f32 %v914, %v971
  %v973 = vpop.f32.mrb[0].mxu0
  %v974 = vadd.f32 %v918, %v973
  %v975 = vpop.f32.mrb[0].mxu0
  %v976 = vpop.f32.mrb[0].mxu0
  %977 = vdwg.mxu0
  %978 = vmatprep.subr.bf16.mxu0 %v904
  %979 = vmatpush1.bf16.msra.mxu0 %v903
  %980 = vmatprep.subr.bf16.mxu0 %v908
  %981 = vmatpush1.bf16.msra.mxu0 %v907
  %982 = vmatprep.subr.bf16.mxu0 %v935
  %983 = vmatpush1.bf16.msra.mxu0 %v932
  %984 = vmatprep.subr.bf16.mxu0 0
  %985 = vmatpush1.bf16.msra.mxu0 0
  %986 = vmatprep.subr.bf16.mxu0 0
  %987 = vmatpush1.bf16.msra.mxu0 0
  %988 = vmatprep.subr.bf16.mxu0 0
  %989 = vmatpush1.bf16.msra.mxu0 0
  %990 = vmatprep.subr.bf16.mxu0 0
  %991 = vmatpush1.bf16.msra.mxu0 0
  %992 = vmatprep.subr.bf16.mxu0 0
  %993 = vmatpush1.bf16.msra.mxu0 0
  %994 = vmatprep.subr.bf16.mxu0 0
  %995 = vmatpush1.bf16.msra.mxu0 0
  %996 = vmatprep.subr.bf16.mxu0 0
  %997 = vmatpush1.bf16.msra.mxu0 0
  %998 = vmatprep.subr.bf16.mxu0 0
  %999 = vmatpush1.bf16.msra.mxu0 0
  %1000 = vmatprep.subr.bf16.mxu0 0
  %1001 = vmatpush1.bf16.msra.mxu0 0
  %1002 = vmatprep.subr.bf16.mxu0 0
  %1003 = vmatpush1.bf16.msra.mxu0 0
  %1004 = vmatprep.subr.bf16.mxu0 0
  %1005 = vmatpush1.bf16.msra.mxu0 0
  %1006 = vmatprep.subr.bf16.mxu0 0
  %1007 = vmatpush1.bf16.msra.mxu0 0
  %1008 = vmatprep.subr.bf16.mxu0 0
  %1009 = vmatpush1.bf16.msra.mxu0 0
  %1010 = vmatprep.mubr.bf16.mxu0 0
  %1011 = vmatmul.mubr.bf16.gmra.mrb[0].mxu0 %v923
  %v1012 = vpop.f32.mrb[0].mxu0
  %v1013 = vadd.f32 %v915, %v1012
  %v1014 = vpop.f32.mrb[0].mxu0
  %v1015 = vadd.f32 %v919, %v1014
  %v1016 = vpop.f32.mrb[0].mxu0
  %v1017 = vpop.f32.mrb[0].mxu0
  %1018 = vdwg.mxu0
  %v1019 = vadd.f32 %v972, %v30
  %v1020 = vadd.f32 %v974, %v40
  %v1021 = vadd.f32 %v1013, %v31
  %v1022 = vadd.f32 %v1015, %v41
  %v1027 = vcombine.low %v1019, %v1020
  %v1028 = vcombine.low %v1021, %v1022
  %1031 = vst [vmem:[%s8] sm:$0xff] %v1027
  %1032 = vst [vmem:[%s8 + $0x8] sm:$0xff] %v1028
  // Predicated region
  $region34: #{residual_cnn.1} parent=0 // pred_check
    _
  $region35: #{residual_cnn.1} parent=0 // pred_check_branch
    %1034 = sbr.rel (0) target = $region37
  $region36: #{residual_cnn.1} parent=0 // pred_region
    _
  $region37: #{residual_cnn.1} parent=0 // pred_fallthru
    _
  // Predicated region
  $region38: #{residual_cnn.1} parent=0 // pred_check
    _
  $region39: #{residual_cnn.1} parent=0 // pred_check_branch
    %1036 = sbr.rel (0) target = $region41
  $region40: #{residual_cnn.1} parent=0 // pred_region
    _
  $region41: #{residual_cnn.1} parent=0 // pred_fallthru
    _

</llo_original>
